<compile_context>
chip_gen: v6e
topology: v6e:2x2x1
jax: 0.10.0
libtpu: 0.0.40
codegen_flags: <defaults>
</compile_context>

<pallas_src>
import functools

import jax
import jax.numpy as jnp
from jax import lax
from jax.experimental import pallas as pl
from jax.experimental.pallas import tpu as pltpu

PAD = 128            # padded hidden/head width (lane-dense)
BLOCK_B_MAX = 2048   # max batch rows per grid step (fits default scoped VMEM
                     # on v5e/v6e/v7x with double buffering)


def _round_up(x, m):
    return (x + m - 1) // m * m


def _cdiv(a, b):
    return (a + b - 1) // b


# ----------------------------------------------------------------------------
# Kernel: fused MLP forward (actor probs + critic value in one output slab)
# ----------------------------------------------------------------------------
def actor_critic_kernel(x_ref, w_ref, b_ref, out_ref, *, n_actions, d_in):
    """x:[Bb,d_in]f32, w:[3,128,128]bf16, b:[3,1,128]f32, out:[Bb,128]bf16."""
    x = x_ref[...].astype(jnp.bfloat16)                      # cast in-kernel

    # layer 1: only the first d_in rows of the padded weight participate
    h = jnp.dot(x, w_ref[0, :d_in, :],
                preferred_element_type=jnp.float32) + b_ref[0]
    h = jnp.maximum(h, 0.0)

    # layer 2: Linear + ReLU (f32 accumulation / elementwise, bf16 MXU operands)
    h = jnp.dot(h.astype(jnp.bfloat16), w_ref[1],
                preferred_element_type=jnp.float32) + b_ref[1]
    h = jnp.maximum(h, 0.0)

    # fused heads: cols [0, n_actions) are actor logits, col n_actions is value
    raw = jnp.dot(h.astype(jnp.bfloat16), w_ref[2],
                  preferred_element_type=jnp.float32) + b_ref[2]

    # (1,128) lane-id row reused for both selects (no [Bb,128] int32 slab)
    lane = lax.broadcasted_iota(jnp.int32, (1, PAD), 1)

    # mask padded lanes; exp(-1e30 - m) underflows to exactly 0 in f32
    logits = jnp.where(lane < n_actions, raw, -1e30)
    m = jnp.max(logits, axis=-1, keepdims=True)
    e = jnp.exp(logits - m)
    s = jnp.sum(e, axis=-1, keepdims=True)
    probs = e / s          # exact divide (mem-bound kernel; keeps sum(probs)=1)

    # single lane-dense bf16 output slab: probs | value | zeros
    out_ref[...] = jnp.where(lane == n_actions, raw, probs).astype(out_ref.dtype)


# ----------------------------------------------------------------------------
# Wrapper
# ----------------------------------------------------------------------------
def _choose_block_b(B):
    B8 = _round_up(max(B, 1), 8)
    if B8 <= 256:
        # Single block.  Use B itself when it is already sublane-aligned so the
        # block equals the full array dims; otherwise a clean 16-row multiple.
        return B if (B % 8 == 0) else _round_up(B, 16)
    # >= 2 blocks so v7x's second TensorCore gets work under "parallel";
    # >= 256 rows so the ~0.35us/step overhead stays small; <= BLOCK_B_MAX.
    half = _round_up(_cdiv(B, 2), 256)
    return max(256, min(BLOCK_B_MAX, half))


def actor_critic_forward(state, packed, n_actions):
    """Returns (probs, value). probs parameterizes Categorical; value is [B,1]."""
    B, D = state.shape
    assert D <= PAD and n_actions + 1 <= PAD, "feature/action dims must fit in 128 lanes"

    block_b = _choose_block_b(B)
    grid = (_cdiv(B, block_b),)   # ragged final block; OOB rows are discarded

    kernel = functools.partial(actor_critic_kernel, n_actions=n_actions, d_in=D)
    out = pl.pallas_call(
        kernel,
        out_shape=jax.ShapeDtypeStruct((B, PAD), jnp.bfloat16),
        grid_spec=pltpu.PrefetchScalarGridSpec(
            num_scalar_prefetch=0,
            grid=grid,
            in_specs=[
                # state streamed as-is: last dim == full array dim (16 lanes,
                # no host-side 128-lane padded/cast slab)
                pl.BlockSpec((block_b, D), lambda i: (i, 0)),
                pl.BlockSpec((3, PAD, PAD), lambda i: (0, 0, 0)),  # weights resident
                pl.BlockSpec((3, 1, PAD), lambda i: (0, 0, 0)),    # biases resident
            ],
            out_specs=pl.BlockSpec((block_b, PAD), lambda i: (i, 0)),
        ),
        compiler_params=pltpu.CompilerParams(
            dimension_semantics=("parallel",)),  # shards batch across TCs on v7x
    )(state, packed["w"], packed["b"])

    # NOTE: downstream consumers could read the packed slab directly to avoid
    # these two small slice dispatches.
    probs = out[:B, :n_actions].astype(jnp.float32)
    value = out[:B, n_actions:n_actions + 1].astype(jnp.float32)
    return probs, value


# ----------------------------------------------------------------------------
# Deterministic parameter init (mirrors the PyTorch __init__):
#   orthogonal_(weight, gain=sqrt(2)) for in_layer/hid,
#   orthogonal_(weight, gain=0.1)     for dist/value heads,
#   biases keep the nn.Linear default U(-1/sqrt(fan_in), 1/sqrt(fan_in)).
# Weights are produced in [in, out] layout (transpose of PyTorch's [out, in]).
# ----------------------------------------------------------------------------
def make_params(key, input_dim, layers, n_actions):
    k = jax.random.split(key, 8)

    def orth(key, fan_in, fan_out, gain):
        # NOTE: orthogonality lands on the transposed side vs torch for
        # non-square layers; forward semantics are unaffected.
        return jax.nn.initializers.orthogonal(scale=gain)(
            key, (fan_in, fan_out), jnp.float32)

    def bias(key, fan_in, fan_out):
        bound = 1.0 / float(fan_in) ** 0.5
        return jax.random.uniform(key, (1, fan_out), jnp.float32, -bound, bound)

    w, f = 2.0 ** 0.5, 0.1
    l0, l1 = layers
    return {
        "w1": orth(k[0], input_dim, l0, w), "b1": bias(k[1], input_dim, l0),
        "w2": orth(k[2], l0, l1, w),        "b2": bias(k[3], l0, l1),
        "wd": orth(k[4], l1, n_actions, f), "bd": bias(k[5], l1, n_actions),
        "wv": orth(k[6], l1, 1, f),         "bv": bias(k[7], l1, 1),
    }


def pack_params(p):
    """Fuse the two heads and pack everything into two VMEM-friendly slabs:
       w: bf16 [3, 128, 128] (zero-padded), b: f32 [3, 1, 128]."""
    wh = jnp.concatenate([p["wd"], p["wv"]], axis=1)    # [L1, A+1]
    bh = jnp.concatenate([p["bd"], p["bv"]], axis=1)    # [1,  A+1]

    def pad_w(w):
        r, c = w.shape
        return jnp.zeros((PAD, PAD), jnp.float32).at[:r, :c].set(w)

    def pad_b(b):
        return jnp.zeros((1, PAD), jnp.float32).at[:, :b.shape[1]].set(b)

    w_slab = jnp.stack([pad_w(p["w1"]), pad_w(p["w2"]), pad_w(wh)]
                       ).astype(jnp.bfloat16)                        # [3,128,128]
    b_slab = jnp.stack([pad_b(p["b1"]), pad_b(p["b2"]), pad_b(bh)])  # [3,1,128]
    return {"w": w_slab, "b": b_slab}


# Plain-JAX references (f32, and bf16-operand variant matching the kernel).
def reference_forward(state, p, use_bf16_matmul=False):
    if use_bf16_matmul:
        dot = lambda a, b: jnp.dot(a.astype(jnp.bfloat16),
                                   b.astype(jnp.bfloat16),
                                   preferred_element_type=jnp.float32)
    else:
        dot = lambda a, b: jnp.dot(a, b, preferred_element_type=jnp.float32)
    h1 = jnp.maximum(dot(state, p["w1"]) + p["b1"], 0.0)
    h2 = jnp.maximum(dot(h1, p["w2"]) + p["b2"], 0.0)
    logits = dot(h2, p["wd"]) + p["bd"]
    probs = jax.nn.softmax(logits, axis=-1)
    value = dot(h2, p["wv"]) + p["bv"]
    return probs, value


if __name__ == "__main__":
    # Small shapes consistent with the module's forward:
    #   input_dims=(16,), layers=[32, 32], n_actions=4, batch=8
    B, D_IN, LAYERS, N_ACTIONS = 8, 16, (32, 32), 4

    key = jax.random.PRNGKey(0)
    key_p, key_x = jax.random.split(key)
    raw = make_params(key_p, D_IN, LAYERS, N_ACTIONS)
    packed = pack_params(raw)
    state = jax.random.normal(key_x, (B, D_IN), jnp.float32)

    probs, value = actor_critic_forward(state, packed, N_ACTIONS)
    probs, value = jax.block_until_ready((probs, value))

    assert probs.shape == (B, N_ACTIONS) and value.shape == (B, 1)

    # Check vs a reference using the same bf16 MXU operands (output is bf16).
    rp16, rv16 = reference_forward(state, raw, use_bf16_matmul=True)
    assert jnp.allclose(probs, rp16, atol=1e-2, rtol=1e-2)
    assert jnp.allclose(value, rv16, atol=1e-2, rtol=1e-2)

    # Loose check vs the pure-f32 reference (bf16 operand/output rounding only).
    rp32, rv32 = reference_forward(state, raw, use_bf16_matmul=False)
    assert jnp.allclose(probs, rp32, atol=3e-2, rtol=3e-2)
    assert jnp.allclose(value, rv32, atol=3e-2, rtol=3e-2)

    assert jnp.allclose(jnp.sum(probs, axis=-1), 1.0, atol=2e-2)
    assert bool(jnp.all(probs >= 0.0))

    # TODO(synk): Categorical distribution object / optimizer setup have no
    # Pallas equivalent; the kernel returns the softmax probs that parameterize
    # the Categorical, plus the critic value.
    print("KERNEL_OK")
</pallas_src>

<mosaic_0001>
module attributes {stable_mosaic.version = 11 : i64} {
  func.func @actor_critic_kernel(%arg0: i32, %arg1: memref<8x16xf32, #tpu.memory_space<vmem>>, %arg2: memref<3x128x128xbf16, #tpu.memory_space<vmem>>, %arg3: memref<3x1x128xf32, #tpu.memory_space<vmem>>, %arg4: memref<8x128xbf16, #tpu.memory_space<vmem>>) attributes {dimension_semantics = [#tpu.dimension_semantics<parallel>], iteration_bounds = array<i64: 1>, scalar_prefetch = 0 : i64, scratch_operands = 0 : i64, tpu.core_type = #tpu.core_type<tc>, window_params = [{transform_indices = @transform_0, window_bounds = array<i64: 8, 16>}, {pipeline_mode = #tpu.pipeline_mode<synchronous>, transform_indices = @transform_1, window_bounds = array<i64: 3, 128, 128>}, {pipeline_mode = #tpu.pipeline_mode<synchronous>, transform_indices = @transform_2, window_bounds = array<i64: 3, 1, 128>}, {transform_indices = @transform_3, window_bounds = array<i64: 8, 128>}]} {
    %c0 = arith.constant 0 : index
    %c0_0 = arith.constant 0 : index
    %0 = vector.load %arg1[%c0, %c0_0] : memref<8x16xf32, #tpu.memory_space<vmem>>, vector<8x16xf32>
    %1 = arith.truncf %0 : vector<8x16xf32> to vector<8x16xbf16>
    %c0_1 = arith.constant 0 : index
    %c0_2 = arith.constant 0 : index
    %c0_3 = arith.constant 0 : index
    %2 = vector.load %arg2[%c0_1, %c0_2, %c0_3] : memref<3x128x128xbf16, #tpu.memory_space<vmem>>, vector<1x16x128xbf16>
    %3 = vector.shape_cast %2 : vector<1x16x128xbf16> to vector<16x128xbf16>
    %cst = arith.constant dense<0.000000e+00> : vector<8x128xf32>
    %4 = tpu.matmul %1, %3, %cst {dimension_numbers = #tpu.dot_dimension_numbers<[1], [0], [0], [1], [0, 0, 1, 1], [], []>} : vector<8x16xbf16>, vector<16x128xbf16>, vector<8x128xf32> -> vector<8x128xf32>
    %c0_4 = arith.constant 0 : index
    %c0_5 = arith.constant 0 : index
    %c0_6 = arith.constant 0 : index
    %5 = vector.load %arg3[%c0_4, %c0_5, %c0_6] : memref<3x1x128xf32, #tpu.memory_space<vmem>>, vector<1x1x128xf32>
    %6 = vector.shape_cast %5 : vector<1x1x128xf32> to vector<1x128xf32>
    %7 = vector.broadcast %6 : vector<1x128xf32> to vector<8x128xf32>
    %8 = arith.addf %4, %7 : vector<8x128xf32>
    %cst_7 = arith.constant 0.000000e+00 : f32
    %9 = vector.broadcast %cst_7 : f32 to vector<8x128xf32>
    %10 = arith.maximumf %8, %9 : vector<8x128xf32>
    %11 = arith.truncf %10 : vector<8x128xf32> to vector<8x128xbf16>
    %c1 = arith.constant 1 : index
    %c0_8 = arith.constant 0 : index
    %c0_9 = arith.constant 0 : index
    %12 = vector.load %arg2[%c1, %c0_8, %c0_9] : memref<3x128x128xbf16, #tpu.memory_space<vmem>>, vector<1x128x128xbf16>
    %13 = vector.shape_cast %12 : vector<1x128x128xbf16> to vector<128x128xbf16>
    %cst_10 = arith.constant dense<0.000000e+00> : vector<8x128xf32>
    %14 = tpu.matmul %11, %13, %cst_10 {dimension_numbers = #tpu.dot_dimension_numbers<[1], [0], [0], [1], [0, 0, 1, 1], [], []>} : vector<8x128xbf16>, vector<128x128xbf16>, vector<8x128xf32> -> vector<8x128xf32>
    %c1_11 = arith.constant 1 : index
    %c0_12 = arith.constant 0 : index
    %c0_13 = arith.constant 0 : index
    %15 = vector.load %arg3[%c1_11, %c0_12, %c0_13] : memref<3x1x128xf32, #tpu.memory_space<vmem>>, vector<1x1x128xf32>
    %16 = vector.shape_cast %15 : vector<1x1x128xf32> to vector<1x128xf32>
    %17 = vector.broadcast %16 : vector<1x128xf32> to vector<8x128xf32>
    %18 = arith.addf %14, %17 : vector<8x128xf32>
    %cst_14 = arith.constant 0.000000e+00 : f32
    %19 = vector.broadcast %cst_14 : f32 to vector<8x128xf32>
    %20 = arith.maximumf %18, %19 : vector<8x128xf32>
    %21 = arith.truncf %20 : vector<8x128xf32> to vector<8x128xbf16>
    %c2 = arith.constant 2 : index
    %c0_15 = arith.constant 0 : index
    %c0_16 = arith.constant 0 : index
    %22 = vector.load %arg2[%c2, %c0_15, %c0_16] : memref<3x128x128xbf16, #tpu.memory_space<vmem>>, vector<1x128x128xbf16>
    %23 = vector.shape_cast %22 : vector<1x128x128xbf16> to vector<128x128xbf16>
    %cst_17 = arith.constant dense<0.000000e+00> : vector<8x128xf32>
    %24 = tpu.matmul %21, %23, %cst_17 {dimension_numbers = #tpu.dot_dimension_numbers<[1], [0], [0], [1], [0, 0, 1, 1], [], []>} : vector<8x128xbf16>, vector<128x128xbf16>, vector<8x128xf32> -> vector<8x128xf32>
    %c2_18 = arith.constant 2 : index
    %c0_19 = arith.constant 0 : index
    %c0_20 = arith.constant 0 : index
    %25 = vector.load %arg3[%c2_18, %c0_19, %c0_20] : memref<3x1x128xf32, #tpu.memory_space<vmem>>, vector<1x1x128xf32>
    %26 = vector.shape_cast %25 : vector<1x1x128xf32> to vector<1x128xf32>
    %27 = vector.broadcast %26 : vector<1x128xf32> to vector<8x128xf32>
    %28 = arith.addf %24, %27 : vector<8x128xf32>
    %29 = tpu.iota {dimensions = array<i32: 1>} : vector<1x128xi32>
    %c4_i32 = arith.constant 4 : i32
    %30 = vector.broadcast %c4_i32 : i32 to vector<1x128xi32>
    %31 = arith.cmpi slt, %29, %30 : vector<1x128xi32>
    %cst_21 = arith.constant -1.000000e+30 : f32
    %32 = vector.shape_cast %31 : vector<1x128xi1> to vector<1x128xi1>
    %33 = vector.broadcast %32 : vector<1x128xi1> to vector<8x128xi1>
    %34 = vector.broadcast %cst_21 : f32 to vector<8x128xf32>
    %35 = arith.select %33, %28, %34 : vector<8x128xi1>, vector<8x128xf32>
    %cst_22 = arith.constant dense<0xFF800000> : vector<8xf32>
    %36 = vector.multi_reduction <maximumf>, %35, %cst_22 [1] : vector<8x128xf32> to vector<8xf32>
    %37 = vector.shape_cast %36 : vector<8xf32> to vector<8x1xf32>
    %38 = vector.broadcast %37 : vector<8x1xf32> to vector<8x128xf32>
    %39 = arith.subf %35, %38 : vector<8x128xf32>
    %40 = math.exp %39 : vector<8x128xf32>
    %cst_23 = arith.constant dense<0.000000e+00> : vector<8xf32>
    %41 = vector.multi_reduction <add>, %40, %cst_23 [1] : vector<8x128xf32> to vector<8xf32>
    %42 = vector.shape_cast %41 : vector<8xf32> to vector<8x1xf32>
    %43 = vector.broadcast %42 : vector<8x1xf32> to vector<8x128xf32>
    %44 = arith.divf %40, %43 : vector<8x128xf32>
    %c4_i32_24 = arith.constant 4 : i32
    %45 = vector.broadcast %c4_i32_24 : i32 to vector<1x128xi32>
    %46 = arith.cmpi eq, %29, %45 : vector<1x128xi32>
    %47 = vector.shape_cast %46 : vector<1x128xi1> to vector<1x128xi1>
    %48 = vector.broadcast %47 : vector<1x128xi1> to vector<8x128xi1>
    %49 = arith.select %48, %28, %44 : vector<8x128xi1>, vector<8x128xf32>
    %50 = arith.truncf %49 : vector<8x128xf32> to vector<8x128xbf16>
    %c0_25 = arith.constant 0 : index
    %c0_26 = arith.constant 0 : index
    %51 = vector.load %arg4[%c0_25, %c0_26] : memref<8x128xbf16, #tpu.memory_space<vmem>>, vector<8x128xbf16>
    tpu.vector_store %arg4[%c0_25, %c0_26], %50 {strides = array<i32>} : memref<8x128xbf16, #tpu.memory_space<vmem>>, vector<8x128xbf16>,
    return
  }
  func.func @transform_0(%arg0: i32) -> (i32, i32) {
    %c0_i32 = arith.constant 0 : i32
    %c0_i32_0 = arith.constant 0 : i32
    return %arg0, %c0_i32 : i32, i32
  }
  func.func @transform_1(%arg0: i32) -> (i32, i32, i32) {
    %c0_i32 = arith.constant 0 : i32
    %c0_i32_0 = arith.constant 0 : i32
    %c0_i32_1 = arith.constant 0 : i32
    %c0_i32_2 = arith.constant 0 : i32
    return %c0_i32, %c0_i32_0, %c0_i32_1 : i32, i32, i32
  }
  func.func @transform_2(%arg0: i32) -> (i32, i32, i32) {
    %c0_i32 = arith.constant 0 : i32
    %c0_i32_0 = arith.constant 0 : i32
    %c0_i32_1 = arith.constant 0 : i32
    %c0_i32_2 = arith.constant 0 : i32
    return %c0_i32, %c0_i32_0, %c0_i32_1 : i32, i32, i32
  }
  func.func @transform_3(%arg0: i32) -> (i32, i32) {
    %c0_i32 = arith.constant 0 : i32
    %c0_i32_0 = arith.constant 0 : i32
    return %arg0, %c0_i32 : i32, i32
  }
}

</mosaic_0001>

<llo_original>
// kernel: tpu_custom_call.1
$region0: #{tpu_custom_call.1}
  #allocation0 [shape = 'u32[]', space=smem, size = 0x4, offset = 0x4, fixed_abs, tag = 'smem constant byte address 0x4 - core index']
  #allocation1 [shape = 'u32[144,128]{1,0:T(1,128)}', space=vmem, size = 0x12000, scoped, tag = 'internal scratch']
  %s0 = inlined_call_operand.hbm [shape: f32[8,16], index: 0, kind: input, shape index: {}]
  %s1 = inlined_call_operand.hbm [shape: bf16[3,128,128], index: 1, kind: input, shape index: {}]
  %s2 = inlined_call_operand.vmem [shape: f32[3,1,128], index: 2, kind: input, shape index: {}]
  %s3 = inlined_call_operand.hbm [shape: bf16[8,128], index: 3, kind: output, shape index: {}]
  %s4 = sld [smem:[#allocation0]]
  $region30: #{tpu_custom_call.1} parent=0
    _
  %s6 = ssub.s32 1, %s4
  %s7 = scalar_select 0, %s6, %s4
  $region1: #{tpu_custom_call.1} parent=0
    #allocation2 [shape = 'u8[4096]{0}', space=vmem, size = 0x1000, scoped, tag = 'input window, operand 0, single buffered']
    #allocation3 [shape = 's32[1]{0}', space=sflag, size = 0x4, scoped, tag = 'scoped memory for tpu_custom_call.1']
    #allocation4 [shape = 's32[1]{0}', space=sflag, size = 0x4, scoped, tag = 'scoped memory for tpu_custom_call.1']
    #allocation5 [shape = 'u8[98304]{0}', space=vmem, size = 0x18000, scoped, tag = 'input window, operand 1, single buffered']
    #allocation6 [shape = 's32[1]{0}', space=sflag, size = 0x4, scoped, tag = 'scoped memory for tpu_custom_call.1']
    #allocation7 [shape = 'u8[2048]{0}', space=vmem, size = 0x800, scoped, tag = 'output window, operand 0, single buffered']
    %8 = vsyncpa [#allocation3], 0
    %9 = vsyncpa [#allocation6], 0
    %10 = vsyncpa [#allocation4], 0
    // Predicated region
    $region2: #{tpu_custom_call.1} parent=1 // pred_check
      _
    $region3: #{tpu_custom_call.1} parent=1 // pred_check_branch
      %12 = sbr.rel (0) target = $region5
    $region4: #{tpu_custom_call.1} parent=1 // pred_region
      %s14 = ssub.s32 128, 128
      %15 = vsyncadd [#allocation3], %s14
      %s17 = sshll.u32 [#allocation2], 4
      %s18 = int_to_ptr.vmem [resolvable:$true] %s17
      %20 = dma.hbm_to_vmem [thread:$0]  %s0, 128, %s18, [#allocation3]
    $region5: #{tpu_custom_call.1} parent=1 // pred_fallthru
      _
    // Predicated region
    $region6: #{tpu_custom_call.1} parent=1 // pred_check
      _
    $region7: #{tpu_custom_call.1} parent=1 // pred_check_branch
      %22 = sbr.rel (0) target = $region9
    $region8: #{tpu_custom_call.1} parent=1 // pred_region
      %s24 = ssub.s32 3072, 3072
      %25 = vsyncadd [#allocation6], %s24
      %s26 = sshll.u32 [#allocation5], 4
      %s27 = int_to_ptr.vmem [resolvable:$true] %s26
      %32 = dma.hbm_to_vmem [thread:$0]  %s1, 3072, %s27, [#allocation6], 64, 64, 4
    $region9: #{tpu_custom_call.1} parent=1 // pred_fallthru
      _
    // Predicated region
    $region10: #{tpu_custom_call.1} parent=1 // pred_check
      _
    $region11: #{tpu_custom_call.1} parent=1 // pred_check_branch
      %34 = sbr.rel (0) target = $region13
    $region12: #{tpu_custom_call.1} parent=1 // pred_region
      _
    $region13: #{tpu_custom_call.1} parent=1 // pred_fallthru
      _
    // Predicated region
    $region14: #{tpu_custom_call.1} parent=1 // pred_check
      _
    $region15: #{tpu_custom_call.1} parent=1 // pred_check_branch
      %36 = sbr.rel (0) target = $region17
    $region16: #{tpu_custom_call.1} parent=1 // pred_region
      %37 = dma.done [#allocation3], 128
    $region17: #{tpu_custom_call.1} parent=1 // pred_fallthru
      _
    // Predicated region
    $region18: #{tpu_custom_call.1} parent=1 // pred_check
      _
    $region19: #{tpu_custom_call.1} parent=1 // pred_check_branch
      %39 = sbr.rel (0) target = $region21
    $region20: #{tpu_custom_call.1} parent=1 // pred_region
      %40 = dma.done [#allocation6], 3072
    $region21: #{tpu_custom_call.1} parent=1 // pred_fallthru
      _
    %v42 = vld [vmem:[#allocation2] sm:$0xff]
    %v43 = vpack.c.bf16 %v42, %v42
    %v44 = vld [vmem:[#allocation5] sm:$0xf]
    %v45 = vld [vmem:[#allocation5 + $0x4] sm:$0xf]
    %v46 = vld [vmem:[%s2] sm:$0x1]
    %v48 = vlaneseq
    %v49 = vshrl.u32 %v48, 7
    %v50 = vsub.s32 0, %v49
    %v51 = vrot.slane %v46, %v50
    %v55 = vunpack.c.l.b16 %v44
    %v56 = vunpack.c.l.b16 %v45
    %v57 = vpack.c.b16 %v56, %v55
    %vm59 = vcmask 130048
    %v61 = vsel %vm59, %v43, 0
    %63 = vmatprep.subr.bf16.mxu0 0
    %64 = vmatpush1.bf16.msra.mxu0 0
    %65 = vmatprep.subr.bf16.mxu0 0
    %66 = vmatpush1.bf16.msra.mxu0 0
    %67 = vmatprep.subr.bf16.mxu0 0
    %68 = vmatpush1.bf16.msra.mxu0 0
    %69 = vmatprep.subr.bf16.mxu0 0
    %70 = vmatpush1.bf16.msra.mxu0 0
    %71 = vmatprep.subr.bf16.mxu0 0
    %72 = vmatpush1.bf16.msra.mxu0 0
    %73 = vmatprep.subr.bf16.mxu0 0
    %74 = vmatpush1.bf16.msra.mxu0 0
    %75 = vmatprep.subr.bf16.mxu0 0
    %76 = vmatpush1.bf16.msra.mxu0 0
    %77 = vmatprep.subr.bf16.mxu0 0
    %78 = vmatpush1.bf16.msra.mxu0 %v57
    %79 = vmatprep.subr.bf16.mxu0 0
    %80 = vmatpush2.bf16.msra.mxu0 0
    %81 = vmatprep.subr.bf16.mxu0 0
    %82 = vmatpush2.bf16.msra.mxu0 0
    %83 = vmatprep.subr.bf16.mxu0 0
    %84 = vmatpush2.bf16.msra.mxu0 0
    %85 = vmatprep.subr.bf16.mxu0 0
    %86 = vmatpush2.bf16.msra.mxu0 0
    %87 = vmatprep.subr.bf16.mxu0 0
    %88 = vmatpush2.bf16.msra.mxu0 0
    %89 = vmatprep.subr.bf16.mxu0 0
    %90 = vmatpush2.bf16.msra.mxu0 0
    %91 = vmatprep.subr.bf16.mxu0 0
    %92 = vmatpush2.bf16.msra.mxu0 0
    %93 = vmatprep.subr.bf16.mxu0 0
    %94 = vmatpush2.bf16.msra.mxu0 0
    %95 = vmatprep.mubr.bf16.mxu0 0
    %96 = vmatmul.mubr.bf16.gmra.mxu0 %v61
    %v97 = vpop.f32.mrf.mxu0
    %v98 = vadd.f32 %v51, %v97
    %v99 = vpop.f32.mrf.mxu0
    %v100 = vpop.f32.mrf.mxu0
    %v101 = vpop.f32.mrf.mxu0
    %102 = vdwg.mxu0
    %v103 = vmax.f32 %v98, 0.0
    %v104 = vpack.c.bf16 %v103, %v103
    %s105 = scalar_lea.vmem [#allocation5], 64
    %v106 = vld [vmem:[%s105] sm:$0xf]
    %v107 = vld [vmem:[%s105 + $0x4] sm:$0xf]
    %v108 = vld [vmem:[%s105 + $0x8] sm:$0xf]
    %v109 = vld [vmem:[%s105 + $0xc] sm:$0xf]
    %v110 = vld [vmem:[%s105 + $0x10] sm:$0xf]
    %v111 = vld [vmem:[%s105 + $0x14] sm:$0xf]
    %v112 = vld [vmem:[%s105 + $0x18] sm:$0xf]
    %v113 = vld [vmem:[%s105 + $0x1c] sm:$0xf]
    %v114 = vld [vmem:[%s105 + $0x20] sm:$0xf]
    %v115 = vld [vmem:[%s105 + $0x24] sm:$0xf]
    %v116 = vld [vmem:[%s105 + $0x28] sm:$0xf]
    %v117 = vld [vmem:[%s105 + $0x2c] sm:$0xf]
    %v118 = vld [vmem:[%s105 + $0x30] sm:$0xf]
    %v119 = vld [vmem:[%s105 + $0x34] sm:$0xf]
    %v120 = vld [vmem:[%s105 + $0x38] sm:$0xf]
    %v121 = vld [vmem:[%s105 + $0x3c] sm:$0xf]
    %s122 = scalar_lea.vmem %s2, 1
    %v123 = vld [vmem:[%s122] sm:$0x1]
    %v125 = vlaneseq
    %v126 = vshrl.u32 %v125, 7
    %v127 = vsub.s32 0, %v126
    %v128 = vrot.slane %v123, %v127
    %v146 = vunpack.c.l.b16 %v106
    %v147 = vunpack.c.l.b16 %v107
    %v148 = vunpack.c.l.b16 %v108
    %v149 = vunpack.c.l.b16 %v109
    %v150 = vunpack.c.l.b16 %v110
    %v151 = vunpack.c.l.b16 %v111
    %v152 = vunpack.c.l.b16 %v112
    %v153 = vunpack.c.l.b16 %v113
    %v154 = vunpack.c.l.b16 %v114
    %v155 = vunpack.c.l.b16 %v115
    %v156 = vunpack.c.l.b16 %v116
    %v157 = vunpack.c.l.b16 %v117
    %v158 = vunpack.c.l.b16 %v118
    %v159 = vunpack.c.l.b16 %v119
    %v160 = vunpack.c.l.b16 %v120
    %v161 = vunpack.c.l.b16 %v121
    %v162 = vpack.c.b16 %v147, %v146
    %v163 = vpack.c.b16 %v149, %v148
    %v164 = vpack.c.b16 %v151, %v150
    %v165 = vpack.c.b16 %v153, %v152
    %v166 = vpack.c.b16 %v155, %v154
    %v167 = vpack.c.b16 %v157, %v156
    %v168 = vpack.c.b16 %v159, %v158
    %v169 = vpack.c.b16 %v161, %v160
    %178 = vmatprep.subr.bf16.mxu0 0
    %179 = vmatpush1.bf16.msra.mxu0 %v169
    %180 = vmatprep.subr.bf16.mxu0 0
    %181 = vmatpush1.bf16.msra.mxu0 %v168
    %182 = vmatprep.subr.bf16.mxu0 0
    %183 = vmatpush1.bf16.msra.mxu0 %v167
    %184 = vmatprep.subr.bf16.mxu0 0
    %185 = vmatpush1.bf16.msra.mxu0 %v166
    %186 = vmatprep.subr.bf16.mxu0 0
    %187 = vmatpush1.bf16.msra.mxu0 %v165
    %188 = vmatprep.subr.bf16.mxu0 0
    %189 = vmatpush1.bf16.msra.mxu0 %v164
    %190 = vmatprep.subr.bf16.mxu0 0
    %191 = vmatpush1.bf16.msra.mxu0 %v163
    %192 = vmatprep.subr.bf16.mxu0 0
    %193 = vmatpush1.bf16.msra.mxu0 %v162
    %194 = vmatprep.subr.bf16.mxu0 0
    %195 = vmatpush2.bf16.msra.mxu0 0
    %196 = vmatprep.subr.bf16.mxu0 0
    %197 = vmatpush2.bf16.msra.mxu0 0
    %198 = vmatprep.subr.bf16.mxu0 0
    %199 = vmatpush2.bf16.msra.mxu0 0
    %200 = vmatprep.subr.bf16.mxu0 0
    %201 = vmatpush2.bf16.msra.mxu0 0
    %202 = vmatprep.subr.bf16.mxu0 0
    %203 = vmatpush2.bf16.msra.mxu0 0
    %204 = vmatprep.subr.bf16.mxu0 0
    %205 = vmatpush2.bf16.msra.mxu0 0
    %206 = vmatprep.subr.bf16.mxu0 0
    %207 = vmatpush2.bf16.msra.mxu0 0
    %208 = vmatprep.subr.bf16.mxu0 0
    %209 = vmatpush2.bf16.msra.mxu0 0
    %210 = vmatprep.mubr.bf16.mxu0 0
    %211 = vmatmul.mubr.bf16.gmra.mxu0 %v104
    %v212 = vpop.f32.mrf.mxu0
    %v213 = vadd.f32 %v128, %v212
    %v214 = vpop.f32.mrf.mxu0
    %v215 = vpop.f32.mrf.mxu0
    %v216 = vpop.f32.mrf.mxu0
    %217 = vdwg.mxu0
    %v218 = vmax.f32 %v213, 0.0
    %v219 = vpack.c.bf16 %v218, %v218
    %s220 = scalar_lea.vmem [#allocation5], 128
    %v221 = vld [vmem:[%s220] sm:$0xf]
    %v222 = vld [vmem:[%s220 + $0x4] sm:$0xf]
    %v223 = vld [vmem:[%s220 + $0x8] sm:$0xf]
    %v224 = vld [vmem:[%s220 + $0xc] sm:$0xf]
    %v225 = vld [vmem:[%s220 + $0x10] sm:$0xf]
    %v226 = vld [vmem:[%s220 + $0x14] sm:$0xf]
    %v227 = vld [vmem:[%s220 + $0x18] sm:$0xf]
    %v228 = vld [vmem:[%s220 + $0x1c] sm:$0xf]
    %v229 = vld [vmem:[%s220 + $0x20] sm:$0xf]
    %v230 = vld [vmem:[%s220 + $0x24] sm:$0xf]
    %v231 = vld [vmem:[%s220 + $0x28] sm:$0xf]
    %v232 = vld [vmem:[%s220 + $0x2c] sm:$0xf]
    %v233 = vld [vmem:[%s220 + $0x30] sm:$0xf]
    %v234 = vld [vmem:[%s220 + $0x34] sm:$0xf]
    %v235 = vld [vmem:[%s220 + $0x38] sm:$0xf]
    %v236 = vld [vmem:[%s220 + $0x3c] sm:$0xf]
    %s237 = scalar_lea.vmem %s2, 2
    %v238 = vld [vmem:[%s237] sm:$0x1]
    %v240 = vlaneseq
    %v241 = vshrl.u32 %v240, 7
    %v242 = vsub.s32 0, %v241
    %v243 = vrot.slane %v238, %v242
    %v261 = vunpack.c.l.b16 %v221
    %v262 = vunpack.c.l.b16 %v222
    %v263 = vunpack.c.l.b16 %v223
    %v264 = vunpack.c.l.b16 %v224
    %v265 = vunpack.c.l.b16 %v225
    %v266 = vunpack.c.l.b16 %v226
    %v267 = vunpack.c.l.b16 %v227
    %v268 = vunpack.c.l.b16 %v228
    %v269 = vunpack.c.l.b16 %v229
    %v270 = vunpack.c.l.b16 %v230
    %v271 = vunpack.c.l.b16 %v231
    %v272 = vunpack.c.l.b16 %v232
    %v273 = vunpack.c.l.b16 %v233
    %v274 = vunpack.c.l.b16 %v234
    %v275 = vunpack.c.l.b16 %v235
    %v276 = vunpack.c.l.b16 %v236
    %v277 = vpack.c.b16 %v262, %v261
    %v278 = vpack.c.b16 %v264, %v263
    %v279 = vpack.c.b16 %v266, %v265
    %v280 = vpack.c.b16 %v268, %v267
    %v281 = vpack.c.b16 %v270, %v269
    %v282 = vpack.c.b16 %v272, %v271
    %v283 = vpack.c.b16 %v274, %v273
    %v284 = vpack.c.b16 %v276, %v275
    %293 = vmatprep.subr.bf16.mxu0 0
    %294 = vmatpush1.bf16.msra.mxu0 %v284
    %295 = vmatprep.subr.bf16.mxu0 0
    %296 = vmatpush1.bf16.msra.mxu0 %v283
    %297 = vmatprep.subr.bf16.mxu0 0
    %298 = vmatpush1.bf16.msra.mxu0 %v282
    %299 = vmatprep.subr.bf16.mxu0 0
    %300 = vmatpush1.bf16.msra.mxu0 %v281
    %301 = vmatprep.subr.bf16.mxu0 0
    %302 = vmatpush1.bf16.msra.mxu0 %v280
    %303 = vmatprep.subr.bf16.mxu0 0
    %304 = vmatpush1.bf16.msra.mxu0 %v279
    %305 = vmatprep.subr.bf16.mxu0 0
    %306 = vmatpush1.bf16.msra.mxu0 %v278
    %307 = vmatprep.subr.bf16.mxu0 0
    %308 = vmatpush1.bf16.msra.mxu0 %v277
    %309 = vmatprep.subr.bf16.mxu0 0
    %310 = vmatpush2.bf16.msra.mxu0 0
    %311 = vmatprep.subr.bf16.mxu0 0
    %312 = vmatpush2.bf16.msra.mxu0 0
    %313 = vmatprep.subr.bf16.mxu0 0
    %314 = vmatpush2.bf16.msra.mxu0 0
    %315 = vmatprep.subr.bf16.mxu0 0
    %316 = vmatpush2.bf16.msra.mxu0 0
    %317 = vmatprep.subr.bf16.mxu0 0
    %318 = vmatpush2.bf16.msra.mxu0 0
    %319 = vmatprep.subr.bf16.mxu0 0
    %320 = vmatpush2.bf16.msra.mxu0 0
    %321 = vmatprep.subr.bf16.mxu0 0
    %322 = vmatpush2.bf16.msra.mxu0 0
    %323 = vmatprep.subr.bf16.mxu0 0
    %324 = vmatpush2.bf16.msra.mxu0 0
    %325 = vmatprep.mubr.bf16.mxu0 0
    %326 = vmatmul.mubr.bf16.gmra.mxu0 %v219
    %v327 = vpop.f32.mrf.mxu0
    %v328 = vadd.f32 %v243, %v327
    %v329 = vpop.f32.mrf.mxu0
    %v330 = vpop.f32.mrf.mxu0
    %v331 = vpop.f32.mrf.mxu0
    %332 = vdwg.mxu0
    %v333 = vlaneseq
    %v334 = vand.u32 %v333, 127
    %vm335 = vcmp.lt.s32.totalorder %v334, 4
    %v336 = vsel %vm335, 1, 0
    %vm337 = vcmp.eq.s32.totalorder %v336, 1
    %v338 = vsel %vm337, %v328, -1e+30
    %339 = vmax.xlane.f32.xlu0 %v338
    %v340 = vpop.xlane.xlu0 %339
    %v341 = vsub.f32 %v338, %v340
    %v342 = vmul.f32 %v341, 1.442695
    %v343 = vpow.pop %v342
    %344 = vadd.xlane.f32.xlu0 %v343
    %v345 = vpop.xlane.xlu0 %344
    %v346 = vrcp.pop %v345
    %v347 = vmul.f32 %v343, %v346
    %vm348 = vcmp.eq.s32.totalorder %v334, 4
    %v349 = vsel %vm348, 1, 0
    %vm350 = vcmp.eq.s32.totalorder %v349, 1
    %v351 = vsel %vm350, %v328, %v347
    %v352 = vpack.c.bf16 %v351, %v351
    %353 = vst [vmem:[#allocation7] sm:$0xf] %v352
    // Predicated region
    $region22: #{tpu_custom_call.1} parent=1 // pred_check
      _
    $region23: #{tpu_custom_call.1} parent=1 // pred_check_branch
      %355 = sbr.rel (0) target = $region25
    $region24: #{tpu_custom_call.1} parent=1 // pred_region
      %s357 = ssub.s32 64, 64
      %358 = vsyncadd [#allocation4], %s357
      %s360 = sshll.u32 [#allocation7], 4
      %s361 = int_to_ptr.vmem [resolvable:$true] %s360
      %363 = dma.vmem_to_hbm [thread:$0]  %s361, 64, %s3, [#allocation4]
    $region25: #{tpu_custom_call.1} parent=1 // pred_fallthru
      _
    // Predicated region
    $region26: #{tpu_custom_call.1} parent=1 // pred_check
      _
    $region27: #{tpu_custom_call.1} parent=1 // pred_check_branch
      %365 = sbr.rel (0) target = $region29
    $region28: #{tpu_custom_call.1} parent=1 // pred_region
      %366 = dma.done [#allocation4], 64
    $region29: #{tpu_custom_call.1} parent=1 // pred_fallthru
      _
    %367 = vsyncpa [#allocation3], 1
    %368 = vsyncpa [#allocation6], 1
    %369 = vsyncpa [#allocation4], 1

</llo_original>
